<compile_context>
chip_gen: v6e
topology: v6e:2x2x1
jax: 0.10.0
libtpu: 0.0.40
codegen_flags: <defaults>
</compile_context>

<pallas_src>
import functools

import jax
import jax.numpy as jnp
import numpy as np
from jax.experimental import pallas as pl
from jax.experimental.pallas import tpu as pltpu

NEG_SLOPE = 0.01      # nn.LeakyReLU default
KSIZE = 7
LANE = 128            # pad channels to a multiple of the lane width (lane-dense I/O)
SUB = 8               # sublane alignment


def _round_up(x, m):
    return -(-x // m) * m


def _cae_layer_kernel(x_ref, w_ref, b_ref, o_ref, buf_ref, *,
                      bblk, t_len, seg, off, ksize, num_layers):
    """grid = (batch_blocks, num_layers); one Conv1d(+LeakyReLU) layer per step.

    x_ref:   (bblk*T, Cpad)        lane-dense input slab for this batch block
    w_ref:   (K*Cpad, Cpad)        this layer's im2col-packed weights
    b_ref:   (1, Cpad)             this layer's bias
    o_ref:   (bblk*T, Cpad)        lane-dense output slab (written at the last layer)
    buf_ref: (bblk*seg + off, Cpad) persistent halo buffer: sequence i lives in interior
             rows [i*seg + off, i*seg + off + T); every other row stays zero and provides
             the "same" zero padding for every layer.
    """
    l = pl.program_id(1)
    pad = ksize // 2
    rows, cpad = buf_ref.shape
    m = rows - 2 * off            # output rows computed per layer (covers every interior row)
    lo = off - pad                # first buffer row read by tap 0 (>= 0 since off >= pad)

    # ---- layer step 0: load this batch block; (re)zero ONLY the halo rows. ----
    @pl.when(l == 0)
    def _load_block():
        buf_ref[0:off, :] = jnp.zeros((off, cpad), buf_ref.dtype)
        for i in range(bblk):                                   # static unroll
            s = i * seg + off
            buf_ref[s:s + t_len, :] = (
                x_ref[i * t_len:(i + 1) * t_len, :].astype(buf_ref.dtype))
            # tail of this segment + head halo of the next segment (or the final tail)
            buf_ref[s + t_len:(i + 1) * seg + off, :] = (
                jnp.zeros((seg - t_len, cpad), buf_ref.dtype))

    # ---- one conv layer: im2col slab -> ONE deep-contraction MXU matmul. ----
    blk = buf_ref[...]                                          # single aligned VMEM read
    # band j holds rows shifted by (j - pad); slab row r corresponds to buffer row r + off.
    slab = jnp.concatenate(
        [blk[lo + j: lo + j + m, :] for j in range(ksize)], axis=1)   # (m, K*Cpad)
    acc = (jnp.dot(slab, w_ref[...], preferred_element_type=jnp.float32)
           + b_ref[...])                                        # bias broadcast (1, Cpad)
    act = jnp.where(acc >= 0.0, acc, NEG_SLOPE * acc)           # LeakyReLU

    # ---- write back interior rows only (halo rows must stay exactly zero). ----
    @pl.when(l < num_layers - 1)
    def _store_hidden():
        for i in range(bblk):
            s = i * seg + off
            buf_ref[s:s + t_len, :] = act[i * seg: i * seg + t_len, :].astype(buf_ref.dtype)

    @pl.when(l == num_layers - 1)
    def _store_output():
        for i in range(bblk):
            o_ref[i * t_len:(i + 1) * t_len, :] = (
                act[i * seg: i * seg + t_len, :].astype(o_ref.dtype))


def _choose_bblk(batch, seg, off, cpad):
    """Pick sequences per grid step: enough rows to feed the MXU (M ~ 256), capped so the
    f32 activation stays ~<= 32 vregs, and leaving >= 2 grid steps for megacore when
    the batch allows."""
    target = max(1, -(-256 // seg))
    cap = max(1, ((128 * 1024) // (4 * cpad) + off) // seg)
    bblk = max(1, min(target, cap, batch))
    if batch >= 2:
        bblk = min(bblk, max(1, batch // 2))
    return bblk


def cae_forward(x, w_all, b_all, *, filter_size=KSIZE, batch_block=None):
    """x: (B, T, in_dim) -> (B, T, in_dim); params from pack_cae_params()."""
    B, T, c_in = x.shape
    L, KC, cpad = w_all.shape
    assert KC == filter_size * cpad
    pad = filter_size // 2
    off = max(SUB, _round_up(pad, SUB))        # 8-aligned head halo (>= pad)
    seg = off + _round_up(T, SUB)              # per-sequence stride in the halo buffer
    bblk = batch_block or _choose_bblk(B, seg, off, cpad)
    nb = -(-B // bblk)
    b_pad = nb * bblk
    rows = bblk * seg + off

    # Lane-dense, batch-padded input: (nb, bblk*T, Cpad).  Padded lanes / padded batch
    # rows are zeros; zero weights & biases keep them exactly zero through every layer.
    xp = jnp.zeros((b_pad, T, cpad), x.dtype).at[:B, :, :c_in].set(x)
    x3d = xp.reshape(nb, bblk * T, cpad)

    kern = functools.partial(_cae_layer_kernel, bblk=bblk, t_len=T, seg=seg,
                             off=off, ksize=filter_size, num_layers=L)
    out3d = pl.pallas_call(
        kern,
        out_shape=jax.ShapeDtypeStruct((nb, bblk * T, cpad), x.dtype),
        grid=(nb, L),
        in_specs=[
            pl.BlockSpec((None, bblk * T, cpad), lambda b, l: (b, 0, 0)),
            pl.BlockSpec((None, KC, cpad), lambda b, l: (l, 0, 0)),
            pl.BlockSpec((None, 1, cpad), lambda b, l: (l, 0, 0)),
        ],
        out_specs=pl.BlockSpec((None, bblk * T, cpad), lambda b, l: (b, 0, 0)),
        scratch_shapes=[pltpu.VMEM((rows, cpad), jnp.float32)],
        compiler_params=pltpu.CompilerParams(
            dimension_semantics=("parallel", "arbitrary"),
            vmem_limit_bytes=32 * 1024 * 1024,
        ),
    )(x3d, w_all, b_all)
    return out3d.reshape(b_pad, T, cpad)[:B, :, :c_in]


# ----------------------------------------------------------------------------
# Parameter construction (mirrors CAE.__init__) and packing for the kernel.
# ----------------------------------------------------------------------------

def _conv_layer_params(key, out_c, in_c, k):
    """nn.Conv1d(in_c, out_c, k) params, converted to (K, Cin, Cout) layout."""
    bound = 1.0 / (in_c * k) ** 0.5
    kw, kb = jax.random.split(key)
    w_pt = jax.random.uniform(kw, (out_c, in_c, k), jnp.float32, -bound, bound)
    b = jax.random.uniform(kb, (out_c,), jnp.float32, -bound, bound)
    w_k = jnp.transpose(w_pt, (2, 1, 0))  # (k, in, out)
    return w_k, b.reshape(1, out_c)


def _convT_layer_params(key, in_c, out_c, k):
    """nn.ConvTranspose1d(in_c, out_c, k, stride=1, padding=k//2) params.

    With stride=1 and padding=k//2 (k odd), ConvTranspose1d equals a regular "same" conv
    with the kernel spatially flipped.
    """
    assert k % 2 == 1, "conversion assumes odd filter_size, stride=1, padding=k//2"
    bound = 1.0 / (out_c * k) ** 0.5
    kw, kb = jax.random.split(key)
    w_t = jax.random.uniform(kw, (in_c, out_c, k), jnp.float32, -bound, bound)
    b = jax.random.uniform(kb, (out_c,), jnp.float32, -bound, bound)
    w_k = jnp.transpose(w_t[:, :, ::-1], (2, 0, 1))  # flip taps -> (k, in, out)
    return w_k, b.reshape(1, out_c)


def build_cae_params(key, in_dim, num_layers=3, hidden_dim=32, filter_size=KSIZE):
    """Deterministic synthetic parameters mirroring CAE.__init__ layer dims."""
    layers = []  # ("conv"|"convT", in_c, out_c)
    prev, h = in_dim, hidden_dim
    for _ in range(num_layers):              # encoder
        layers.append(("conv", prev, h))
        prev, h = h, h // 2
    h = prev * 2
    for _ in range(num_layers - 1):          # decoder (all but last)
        layers.append(("convT", prev, h))
        prev, h = h, h * 2
    layers.append(("convT", prev, in_dim))   # final decoder layer

    params = []
    keys = jax.random.split(key, len(layers))
    for k_i, (kind, cin, cout) in zip(keys, layers):
        if kind == "conv":
            params.append(_conv_layer_params(k_i, cout, cin, filter_size))
        else:
            params.append(_convT_layer_params(k_i, cin, cout, filter_size))
    return params


def pack_cae_params(params):
    """Zero-pad channels to a lane-dense common width and pack weights in im2col layout
    (L, K*Cpad, Cpad) so each layer is a single deep-contraction matmul."""
    L = len(params)
    K = params[0][0].shape[0]
    cmax = max(max(w.shape[1], w.shape[2]) for w, _ in params)
    cpad = _round_up(cmax, LANE)
    w_all = jnp.zeros((L, K * cpad, cpad), jnp.float32)
    b_all = jnp.zeros((L, 1, cpad), jnp.float32)
    for l, (w, b) in enumerate(params):
        _, cin, cout = w.shape
        for j in range(K):
            w_all = w_all.at[l, j * cpad:j * cpad + cin, :cout].set(w[j])
        b_all = b_all.at[l, 0, :cout].set(b[0])
    return w_all, b_all


def cae_forward_ref(x, params):
    """Pure-JAX (XLA) reference with the same conv-as-matmul math, for validation."""
    out = x
    for w, b in params:
        k = w.shape[0]
        pad = k // 2
        T = out.shape[1]
        xp = jnp.pad(out, ((0, 0), (pad, pad), (0, 0)))
        acc = sum(jnp.einsum("btc,co->bto", xp[:, j:j + T, :], w[j])
                  for j in range(k)) + b
        out = jnp.where(acc >= 0, acc, NEG_SLOPE * acc)
    return out


if __name__ == "__main__":
    B, T, IN_DIM, HIDDEN = 2, 16, 4, 32
    key = jax.random.PRNGKey(0)
    kx, kp = jax.random.split(key)
    x = jax.random.normal(kx, (B, T, IN_DIM), jnp.float32)

    params = build_cae_params(kp, IN_DIM, num_layers=3, hidden_dim=HIDDEN)
    w_all, b_all = pack_cae_params(params)

    y = cae_forward(x, w_all, b_all)
    jax.block_until_ready(y)

    assert y.shape == (B, T, IN_DIM), y.shape
    assert y.dtype == jnp.float32

    y_ref = cae_forward_ref(x, params)
    np.testing.assert_allclose(np.asarray(y), np.asarray(y_ref), rtol=5e-2, atol=1e-2)
    print("KERNEL_OK")
</pallas_src>

<mosaic_0001>
module attributes {stable_mosaic.version = 11 : i64} {
  func.func @_cae_layer_kernel(%arg0: i32, %arg1: i32, %arg2: memref<1x16x128xf32, #tpu.memory_space<vmem>>, %arg3: memref<1x896x128xf32, #tpu.memory_space<vmem>>, %arg4: memref<1x1x128xf32, #tpu.memory_space<vmem>>, %arg5: memref<1x16x128xf32, #tpu.memory_space<vmem>>, %arg6: memref<32x128xf32, #tpu.memory_space<vmem>>) attributes {dimension_semantics = [#tpu.dimension_semantics<parallel>, #tpu.dimension_semantics<arbitrary>], iteration_bounds = array<i64: 2, 6>, scalar_prefetch = 0 : i64, scratch_operands = 1 : i64, tpu.core_type = #tpu.core_type<tc>, window_params = [{transform_indices = @transform_0, window_bounds = array<i64: 1, 16, 128>}, {transform_indices = @transform_1, window_bounds = array<i64: 1, 896, 128>}, {transform_indices = @transform_2, window_bounds = array<i64: 1, 1, 128>}, {transform_indices = @transform_3, window_bounds = array<i64: 1, 16, 128>}]} {
    %c0_i32 = arith.constant 0 : i32
    %0 = arith.cmpi eq, %arg1, %c0_i32 : i32
    %1 = arith.extui %0 : i1 to i32
    %c0_i32_0 = arith.constant 0 : i32
    %2 = arith.cmpi ne, %1, %c0_i32_0 : i32
    scf.if %2 {
      %cst_13 = arith.constant 0.000000e+00 : f32
      %30 = vector.broadcast %cst_13 : f32 to vector<8x128xf32>
      %c0_14 = arith.constant 0 : index
      %c0_15 = arith.constant 0 : index
      %31 = vector.load %arg6[%c0_14, %c0_15] : memref<32x128xf32, #tpu.memory_space<vmem>>, vector<8x128xf32>
      tpu.vector_store %arg6[%c0_14, %c0_15], %30 {strides = array<i32>} : memref<32x128xf32, #tpu.memory_space<vmem>>, vector<8x128xf32>,
      %c0_16 = arith.constant 0 : index
      %c0_17 = arith.constant 0 : index
      %c0_18 = arith.constant 0 : index
      %32 = vector.load %arg2[%c0_16, %c0_17, %c0_18] : memref<1x16x128xf32, #tpu.memory_space<vmem>>, vector<1x16x128xf32>
      %33 = vector.shape_cast %32 : vector<1x16x128xf32> to vector<16x128xf32>
      %c8 = arith.constant 8 : index
      %c0_19 = arith.constant 0 : index
      %34 = vector.load %arg6[%c8, %c0_19] : memref<32x128xf32, #tpu.memory_space<vmem>>, vector<16x128xf32>
      tpu.vector_store %arg6[%c8, %c0_19], %33 {strides = array<i32>} : memref<32x128xf32, #tpu.memory_space<vmem>>, vector<16x128xf32>,
      %cst_20 = arith.constant 0.000000e+00 : f32
      %35 = vector.broadcast %cst_20 : f32 to vector<8x128xf32>
      %c24 = arith.constant 24 : index
      %c0_21 = arith.constant 0 : index
      %36 = vector.load %arg6[%c24, %c0_21] : memref<32x128xf32, #tpu.memory_space<vmem>>, vector<8x128xf32>
      tpu.vector_store %arg6[%c24, %c0_21], %35 {strides = array<i32>} : memref<32x128xf32, #tpu.memory_space<vmem>>, vector<8x128xf32>,
    } else {
    }
    %c0 = arith.constant 0 : index
    %c0_1 = arith.constant 0 : index
    %3 = vector.load %arg6[%c0, %c0_1] : memref<32x128xf32, #tpu.memory_space<vmem>>, vector<32x128xf32>
    %4 = vector.extract_strided_slice %3 {offsets = [5, 0], sizes = [16, 128], strides = [1, 1]} : vector<32x128xf32> to vector<16x128xf32>
    %5 = vector.extract_strided_slice %3 {offsets = [6, 0], sizes = [16, 128], strides = [1, 1]} : vector<32x128xf32> to vector<16x128xf32>
    %6 = vector.extract_strided_slice %3 {offsets = [7, 0], sizes = [16, 128], strides = [1, 1]} : vector<32x128xf32> to vector<16x128xf32>
    %7 = vector.extract_strided_slice %3 {offsets = [8, 0], sizes = [16, 128], strides = [1, 1]} : vector<32x128xf32> to vector<16x128xf32>
    %8 = vector.extract_strided_slice %3 {offsets = [9, 0], sizes = [16, 128], strides = [1, 1]} : vector<32x128xf32> to vector<16x128xf32>
    %9 = vector.extract_strided_slice %3 {offsets = [10, 0], sizes = [16, 128], strides = [1, 1]} : vector<32x128xf32> to vector<16x128xf32>
    %10 = vector.extract_strided_slice %3 {offsets = [11, 0], sizes = [16, 128], strides = [1, 1]} : vector<32x128xf32> to vector<16x128xf32>
    %11 = tpu.concatenate %4, %5, %6, %7, %8, %9, %10 in 1 : vector<16x128xf32>, vector<16x128xf32>, vector<16x128xf32>, vector<16x128xf32>, vector<16x128xf32>, vector<16x128xf32>, vector<16x128xf32> -> vector<16x896xf32>
    %c0_2 = arith.constant 0 : index
    %c0_3 = arith.constant 0 : index
    %c0_4 = arith.constant 0 : index
    %12 = vector.load %arg3[%c0_2, %c0_3, %c0_4] : memref<1x896x128xf32, #tpu.memory_space<vmem>>, vector<1x896x128xf32>
    %13 = vector.shape_cast %12 : vector<1x896x128xf32> to vector<896x128xf32>
    %cst = arith.constant dense<0.000000e+00> : vector<16x128xf32>
    %14 = tpu.matmul %11, %13, %cst {dimension_numbers = #tpu.dot_dimension_numbers<[1], [0], [0], [1], [0, 0, 1, 1], [], []>} : vector<16x896xf32>, vector<896x128xf32>, vector<16x128xf32> -> vector<16x128xf32>
    %c0_5 = arith.constant 0 : index
    %c0_6 = arith.constant 0 : index
    %c0_7 = arith.constant 0 : index
    %15 = vector.load %arg4[%c0_5, %c0_6, %c0_7] : memref<1x1x128xf32, #tpu.memory_space<vmem>>, vector<1x1x128xf32>
    %16 = vector.shape_cast %15 : vector<1x1x128xf32> to vector<1x128xf32>
    %17 = vector.broadcast %16 : vector<1x128xf32> to vector<16x128xf32>
    %18 = arith.addf %14, %17 : vector<16x128xf32>
    %cst_8 = arith.constant 0.000000e+00 : f32
    %19 = vector.broadcast %cst_8 : f32 to vector<16x128xf32>
    %20 = arith.cmpf oge, %18, %19 : vector<16x128xf32>
    %cst_9 = arith.constant 0.00999999977 : f32
    %21 = vector.broadcast %cst_9 : f32 to vector<16x128xf32>
    %22 = arith.mulf %21, %18 : vector<16x128xf32>
    %23 = arith.select %20, %18, %22 : vector<16x128xi1>, vector<16x128xf32>
    %c5_i32 = arith.constant 5 : i32
    %24 = arith.cmpi slt, %arg1, %c5_i32 : i32
    %25 = arith.extui %24 : i1 to i32
    %c0_i32_10 = arith.constant 0 : i32
    %26 = arith.cmpi ne, %25, %c0_i32_10 : i32
    scf.if %26 {
      %c8 = arith.constant 8 : index
      %c0_13 = arith.constant 0 : index
      %30 = vector.load %arg6[%c8, %c0_13] : memref<32x128xf32, #tpu.memory_space<vmem>>, vector<16x128xf32>
      tpu.vector_store %arg6[%c8, %c0_13], %23 {strides = array<i32>} : memref<32x128xf32, #tpu.memory_space<vmem>>, vector<16x128xf32>,
    } else {
    }
    %c5_i32_11 = arith.constant 5 : i32
    %27 = arith.cmpi eq, %arg1, %c5_i32_11 : i32
    %28 = arith.extui %27 : i1 to i32
    %c0_i32_12 = arith.constant 0 : i32
    %29 = arith.cmpi ne, %28, %c0_i32_12 : i32
    scf.if %29 {
      %c0_13 = arith.constant 0 : index
      %c0_14 = arith.constant 0 : index
      %c0_15 = arith.constant 0 : index
      %30 = vector.load %arg5[%c0_13, %c0_14, %c0_15] : memref<1x16x128xf32, #tpu.memory_space<vmem>>, vector<1x16x128xf32>
      %31 = vector.shape_cast %30 : vector<1x16x128xf32> to vector<16x128xf32>
      %32 = vector.shape_cast %23 : vector<16x128xf32> to vector<1x16x128xf32>
      tpu.vector_store %arg5[%c0_13, %c0_14, %c0_15], %32 {strides = array<i32>} : memref<1x16x128xf32, #tpu.memory_space<vmem>>, vector<1x16x128xf32>,
    } else {
    }
    return
  }
  func.func @transform_0(%arg0: i32, %arg1: i32) -> (i32, i32, i32) {
    %c0_i32 = arith.constant 0 : i32
    %c0_i32_0 = arith.constant 0 : i32
    %c0_i32_1 = arith.constant 0 : i32
    return %arg0, %c0_i32, %c0_i32_0 : i32, i32, i32
  }
  func.func @transform_1(%arg0: i32, %arg1: i32) -> (i32, i32, i32) {
    %c0_i32 = arith.constant 0 : i32
    %c0_i32_0 = arith.constant 0 : i32
    %c0_i32_1 = arith.constant 0 : i32
    return %arg1, %c0_i32, %c0_i32_0 : i32, i32, i32
  }
  func.func @transform_2(%arg0: i32, %arg1: i32) -> (i32, i32, i32) {
    %c0_i32 = arith.constant 0 : i32
    %c0_i32_0 = arith.constant 0 : i32
    %c0_i32_1 = arith.constant 0 : i32
    return %arg1, %c0_i32, %c0_i32_0 : i32, i32, i32
  }
  func.func @transform_3(%arg0: i32, %arg1: i32) -> (i32, i32, i32) {
    %c0_i32 = arith.constant 0 : i32
    %c0_i32_0 = arith.constant 0 : i32
    %c0_i32_1 = arith.constant 0 : i32
    return %arg0, %c0_i32, %c0_i32_0 : i32, i32, i32
  }
}

</mosaic_0001>

<llo_original>
// kernel: tpu_custom_call.1
$region0: #{tpu_custom_call.1}
  #allocation0 [shape = 'u32[]', space=smem, size = 0x4, offset = 0x4, fixed_abs, tag = 'smem constant byte address 0x4 - core index']
  #allocation1 [shape = 'u32[144,128]{1,0:T(1,128)}', space=vmem, size = 0x12000, scoped, tag = 'internal scratch']
  #allocation2 [shape = 'f32[32,128]{1,0:T(8,128)}', space=vmem, size = 0x4000, scoped, tag = 'scratch operand']
  %s0 = inlined_call_operand.hbm [shape: f32[2,16,128], index: 0, kind: input, shape index: {}]
  %s1 = inlined_call_operand.hbm [shape: f32[6,896,128], index: 1, kind: input, shape index: {}]
  %s2 = inlined_call_operand.hbm [shape: f32[6,1,128], index: 2, kind: input, shape index: {}]
  %s3 = inlined_call_operand.hbm [shape: f32[2,16,128], index: 3, kind: output, shape index: {}]
  %s4 = sld [smem:[#allocation0]]
  $region69: #{tpu_custom_call.1} parent=0
    _
  %s6 = ssub.s32 1, %s4
  %s7 = scalar_select 0, %s6, %s4
  $region1: #{tpu_custom_call.1} parent=0
    #allocation3 [shape = 'u8[16384]{0}', space=vmem, size = 0x4000, scoped, tag = 'input window, operand 0']
    #allocation4 [shape = 's32[2]{0}', space=sflag, size = 0x8, scoped, tag = 'scoped memory for tpu_custom_call.1']
    #allocation5 [shape = 's32[2]{0}', space=sflag, size = 0x8, scoped, tag = 'scoped memory for tpu_custom_call.1']
    #allocation6 [shape = 'u8[917504]{0}', space=vmem, size = 0xe0000, scoped, tag = 'input window, operand 1']
    #allocation7 [shape = 's32[2]{0}', space=sflag, size = 0x8, scoped, tag = 'scoped memory for tpu_custom_call.1']
    #allocation8 [shape = 'u8[1024]{0}', space=vmem, size = 0x400, scoped, tag = 'input window, operand 2']
    #allocation9 [shape = 'u8[16384]{0}', space=vmem, size = 0x4000, scoped, tag = 'output window, operand 0']
    %8 = vsyncpa [#allocation4], 0
    %s9 = scalar_lea.sflag [#allocation4], 1
    %10 = vsyncpa %s9, 0
    %11 = vsyncpa [#allocation7], 0
    %s12 = scalar_lea.sflag [#allocation7], 1
    %13 = vsyncpa %s12, 0
    %14 = vsyncpa [#allocation5], 0
    %s15 = scalar_lea.sflag [#allocation5], 1
    %16 = vsyncpa %s15, 0
    loop: start=0, step=1, limit=14
    $region2: #{tpu_custom_call.1} parent=1 // loop_pre_header
      _
    $region3: #{tpu_custom_call.1} parent=1 // loop_header
      %s18 = sphi 0, %s22
      %p19 = scmp.ge.s32.totalorder %s18, 14
      %s25 = sphi 0, %s37
      %s26 = sphi 0, %s33
      %s27 = sphi 0, %s25
      %s28 = sphi 0, %s26
      %s29 = sphi 0, %s27
      %s30 = sphi 0, %s28
      %s40 = sphi 0, %s42
      %s43 = sphi 0, %s40
      %s44 = sphi 0, %s43
      %s60 = sphi 0, %s44
      %s66 = sphi 0, %s68
      %s69 = sphi 0, %s66
      %s70 = sphi 0, %s69
      %s86 = sphi 0, %s70
      %s92 = sphi 0, %s94
      %s95 = sphi 0, %s92
      %s96 = sphi 0, %s95
      %s112 = sphi 0, %s96
      %s118 = sphi 0, %s120
      %s121 = sphi 0, %s118
      %s122 = sphi 0, %s121
      %s138 = sphi 0, %s122
    $region4: #{tpu_custom_call.1} parent=1 // loop_header_branch
      %21 = sbr.rel (%p19) target = $region8
    $region5: #{tpu_custom_call.1} parent=1 // loop_body
      %s23 = ssub.s32 %s18, 1
      %s24 = ssub.s32 %s18, 2
      %s31 = sadd.s32 1, %s26
      %p32 = scmp.ge.s32.totalorder %s31, 6
      %s33 = scalar_select %p32, 0, %s31
      %s34 = sadd.s32 1, %s25
      %s35 = scalar_select %p32, %s34, %s25
      %p36 = scmp.ge.s32.totalorder %s35, 2
      %s37 = scalar_select %p36, 0, %s35
      %s38 = ssub.s32 %s25, %s37
      %p39 = scmp.eq.s32.totalorder %s38, 0
      %s41 = sadd.s32 %s40, 1
      %s42 = scalar_select %p39, %s40, %s41
      %p45 = pneg %p39
      %p46 = scmp.eq.s32.totalorder %s18, 11
      %p47 = por %p45, %p46
      %p48 = scmp.ne.s32.totalorder %s40, %s43
      %p49 = scmp.eq.s32.totalorder %s18, 0
      %p50 = por %p48, %p49
      %p51 = scmp.ne.s32.totalorder %s40, %s43
      %p52 = scmp.eq.s32.totalorder %s23, 11
      %p53 = por %p51, %p52
      %p54 = scmp.ne.s32.totalorder %s43, %s44
      %p55 = scmp.eq.s32.totalorder %s23, 0
      %p56 = por %p54, %p55
      %p57 = scmp.ne.s32.totalorder %s43, %s44
      %p58 = scmp.eq.s32.totalorder %s24, 11
      %p59 = por %p57, %p58
      %p61 = scmp.ne.s32.totalorder %s44, %s60
      %p62 = scmp.eq.s32.totalorder %s24, 0
      %p63 = por %p61, %p62
      %s64 = ssub.s32 %s26, %s33
      %p65 = scmp.eq.s32.totalorder %s64, 0
      %s67 = sadd.s32 %s66, 1
      %s68 = scalar_select %p65, %s66, %s67
      %p71 = pneg %p65
      %p72 = scmp.eq.s32.totalorder %s18, 11
      %p73 = por %p71, %p72
      %p74 = scmp.ne.s32.totalorder %s66, %s69
      %p75 = scmp.eq.s32.totalorder %s18, 0
      %p76 = por %p74, %p75
      %p77 = scmp.ne.s32.totalorder %s66, %s69
      %p78 = scmp.eq.s32.totalorder %s23, 11
      %p79 = por %p77, %p78
      %p80 = scmp.ne.s32.totalorder %s69, %s70
      %p81 = scmp.eq.s32.totalorder %s23, 0
      %p82 = por %p80, %p81
      %p83 = scmp.ne.s32.totalorder %s69, %s70
      %p84 = scmp.eq.s32.totalorder %s24, 11
      %p85 = por %p83, %p84
      %p87 = scmp.ne.s32.totalorder %s70, %s86
      %p88 = scmp.eq.s32.totalorder %s24, 0
      %p89 = por %p87, %p88
      %s90 = ssub.s32 %s26, %s33
      %p91 = scmp.eq.s32.totalorder %s90, 0
      %s93 = sadd.s32 %s92, 1
      %s94 = scalar_select %p91, %s92, %s93
      %p97 = pneg %p91
      %p98 = scmp.eq.s32.totalorder %s18, 11
      %p99 = por %p97, %p98
      %p100 = scmp.ne.s32.totalorder %s92, %s95
      %p101 = scmp.eq.s32.totalorder %s18, 0
      %p102 = por %p100, %p101
      %p103 = scmp.ne.s32.totalorder %s92, %s95
      %p104 = scmp.eq.s32.totalorder %s23, 11
      %p105 = por %p103, %p104
      %p106 = scmp.ne.s32.totalorder %s95, %s96
      %p107 = scmp.eq.s32.totalorder %s23, 0
      %p108 = por %p106, %p107
      %p109 = scmp.ne.s32.totalorder %s95, %s96
      %p110 = scmp.eq.s32.totalorder %s24, 11
      %p111 = por %p109, %p110
      %p113 = scmp.ne.s32.totalorder %s96, %s112
      %p114 = scmp.eq.s32.totalorder %s24, 0
      %p115 = por %p113, %p114
      %s116 = ssub.s32 %s25, %s37
      %p117 = scmp.eq.s32.totalorder %s116, 0
      %s119 = sadd.s32 %s118, 1
      %s120 = scalar_select %p117, %s118, %s119
      %p123 = pneg %p117
      %p124 = scmp.eq.s32.totalorder %s18, 11
      %p125 = por %p123, %p124
      %p126 = scmp.ne.s32.totalorder %s118, %s121
      %p127 = scmp.eq.s32.totalorder %s18, 0
      %p128 = por %p126, %p127
      %p129 = scmp.ne.s32.totalorder %s118, %s121
      %p130 = scmp.eq.s32.totalorder %s23, 11
      %p131 = por %p129, %p130
      %p132 = scmp.ne.s32.totalorder %s121, %s122
      %p133 = scmp.eq.s32.totalorder %s23, 0
      %p134 = por %p132, %p133
      %p135 = scmp.ne.s32.totalorder %s121, %s122
      %p136 = scmp.eq.s32.totalorder %s24, 11
      %p137 = por %p135, %p136
      %p139 = scmp.ne.s32.totalorder %s122, %s138
      %p140 = scmp.eq.s32.totalorder %s24, 0
      %p141 = por %p139, %p140
      %p142 = scmp.le.s32.totalorder 1, %s18
      %p143 = scmp.lt.s32.totalorder %s18, 13
      %p144 = pnand %p142, %p143
      %p145 = pneg %p144
      // Predicated region
      $region9: #{tpu_custom_call.1} parent=5 // pred_check
        _
      $region10: #{tpu_custom_call.1} parent=5 // pred_check_branch
        %147 = sbr.rel (%p144) target = $region12
      $region11: #{tpu_custom_call.1} parent=5 // pred_region
        %s148 = ssub.s32 %s18, 1
      $region12: #{tpu_custom_call.1} parent=5 // pred_fallthru
        _
      %p149 = scmp.lt.s32.totalorder %s18, 12
      // Predicated region
      $region13: #{tpu_custom_call.1} parent=5 // pred_check
        %p150 = pneg %p149
      $region14: #{tpu_custom_call.1} parent=5 // pred_check_branch
        %152 = sbr.rel (%p150) target = $region16
      $region15: #{tpu_custom_call.1} parent=5 // pred_region
        // Predicated region
        $region17: #{tpu_custom_call.1} parent=15 // pred_check
          %p153 = pneg %p50
        $region18: #{tpu_custom_call.1} parent=15 // pred_check_branch
          %155 = sbr.rel (%p153) target = $region20
        $region19: #{tpu_custom_call.1} parent=15 // pred_region
          %s156 = sand.u32 %s40, 1
          %s157 = scalar_lea.sflag [#allocation4], %s156
          %s158 = sand.u32 %s40, 1
          %s159 = smul.addr %s158, 16
          %s160 = scalar_lea.vmem [#allocation3], %s159
          %s162 = ssub.s32 256, 256
          %163 = vsyncadd %s157, %s162
          %s164 = smul.addr %s25, 2
          %s165 = smul.addr %s164, 128
          %s166 = scalar_lea.hbm %s0, %s165
          %s167 = sshll.u32 %s160, 4
          %s168 = int_to_ptr.vmem [resolvable:$true] %s167
          %173 = dma.hbm_to_vmem [thread:$0]  %s166, 256, %s168, %s157, 128, 128, 8
        $region20: #{tpu_custom_call.1} parent=15 // pred_fallthru
          _
        // Predicated region
        $region21: #{tpu_custom_call.1} parent=15 // pred_check
          %p174 = pneg %p76
        $region22: #{tpu_custom_call.1} parent=15 // pred_check_branch
          %176 = sbr.rel (%p174) target = $region24
        $region23: #{tpu_custom_call.1} parent=15 // pred_region
          %s177 = sand.u32 %s18, 1
          %s178 = scalar_lea.sflag [#allocation7], %s177
          %s179 = sand.u32 %s66, 1
          %s180 = smul.addr %s179, 896
          %s181 = scalar_lea.vmem [#allocation6], %s180
          %s183 = ssub.s32 14336, 14336
          %184 = vsyncadd %s178, %s183
          %s185 = smul.addr %s26, 112
          %s186 = smul.addr %s185, 128
          %s187 = scalar_lea.hbm %s1, %s186
          %s188 = sshll.u32 %s181, 4
          %s189 = int_to_ptr.vmem [resolvable:$true] %s188
          %194 = dma.hbm_to_vmem [thread:$0]  %s187, 14336, %s189, %s178, 128, 128, 8
        $region24: #{tpu_custom_call.1} parent=15 // pred_fallthru
          _
        // Predicated region
        $region25: #{tpu_custom_call.1} parent=15 // pred_check
          %p195 = pneg %p102
        $region26: #{tpu_custom_call.1} parent=15 // pred_check_branch
          %197 = sbr.rel (%p195) target = $region28
        $region27: #{tpu_custom_call.1} parent=15 // pred_region
          %s198 = sand.u32 %s18, 1
          %s199 = scalar_lea.sflag [#allocation7], %s198
          %s200 = sand.u32 %s92, 1
          %s201 = scalar_lea.vmem [#allocation8], %s200
          %s203 = ssub.s32 16, 16
          %204 = vsyncadd %s199, %s203
          %s205 = smul.addr %s26, 16
          %s206 = scalar_lea.hbm %s2, %s205
          %s208 = sshll.u32 %s201, 4
          %s209 = int_to_ptr.vmem [resolvable:$true] %s208
          %211 = dma.hbm_to_vmem [thread:$0]  %s206, 16, %s209, %s199
        $region28: #{tpu_custom_call.1} parent=15 // pred_fallthru
          _
      $region16: #{tpu_custom_call.1} parent=5 // pred_fallthru
        _
      %p212 = scmp.le.s32.totalorder 1, %s18
      %p213 = scmp.lt.s32.totalorder %s18, 13
      %p214 = pnand %p212, %p213
      %p215 = pneg %p214
      // Predicated region
      $region29: #{tpu_custom_call.1} parent=5 // pred_check
        _
      $region30: #{tpu_custom_call.1} parent=5 // pred_check_branch
        %217 = sbr.rel (%p214) target = $region32
      $region31: #{tpu_custom_call.1} parent=5 // pred_region
        %s218 = ssub.s32 %s18, 1
        %s219 = sand.u32 %s43, 1
        %s220 = scalar_lea.sflag [#allocation4], %s219
        %s221 = sand.u32 %s43, 1
        %s222 = smul.addr %s221, 16
        %s223 = scalar_lea.vmem [#allocation3], %s222
        // Predicated region
        $region33: #{tpu_custom_call.1} parent=31 // pred_check
          %p224 = pneg %p56
        $region34: #{tpu_custom_call.1} parent=31 // pred_check_branch
          %226 = sbr.rel (%p224) target = $region36
        $region35: #{tpu_custom_call.1} parent=31 // pred_region
          %227 = dma.done %s220, 256
        $region36: #{tpu_custom_call.1} parent=31 // pred_fallthru
          _
        %s228 = sand.u32 %s23, 1
        %s229 = scalar_lea.sflag [#allocation7], %s228
        %s230 = sand.u32 %s69, 1
        %s231 = smul.addr %s230, 896
        %s232 = scalar_lea.vmem [#allocation6], %s231
        // Predicated region
        $region37: #{tpu_custom_call.1} parent=31 // pred_check
          %p233 = pneg %p82
        $region38: #{tpu_custom_call.1} parent=31 // pred_check_branch
          %235 = sbr.rel (%p233) target = $region40
        $region39: #{tpu_custom_call.1} parent=31 // pred_region
          %236 = dma.done %s229, 14336
        $region40: #{tpu_custom_call.1} parent=31 // pred_fallthru
          _
        %s237 = sand.u32 %s23, 1
        %s238 = scalar_lea.sflag [#allocation7], %s237
        %s239 = sand.u32 %s95, 1
        %s240 = scalar_lea.vmem [#allocation8], %s239
        // Predicated region
        $region41: #{tpu_custom_call.1} parent=31 // pred_check
          %p241 = pneg %p108
        $region42: #{tpu_custom_call.1} parent=31 // pred_check_branch
          %243 = sbr.rel (%p241) target = $region44
        $region43: #{tpu_custom_call.1} parent=31 // pred_region
          %244 = dma.done %s238, 16
        $region44: #{tpu_custom_call.1} parent=31 // pred_fallthru
          _
        %s245 = sand.u32 %s43, 1
        %s246 = scalar_lea.sflag [#allocation4], %s245
        %s247 = sand.u32 %s43, 1
        %s248 = smul.addr %s247, 16
        %s249 = scalar_lea.vmem [#allocation3], %s248
        %p250 = pneg %p56
        %p251 = pneg %p53
        %s252 = sand.u32 %s23, 1
        %s253 = scalar_lea.sflag [#allocation7], %s252
        %s254 = sand.u32 %s69, 1
        %s255 = smul.addr %s254, 896
        %s256 = scalar_lea.vmem [#allocation6], %s255
        %p257 = pneg %p82
        %p258 = pneg %p79
        %s259 = sand.u32 %s23, 1
        %s260 = scalar_lea.sflag [#allocation7], %s259
        %s261 = sand.u32 %s95, 1
        %s262 = scalar_lea.vmem [#allocation8], %s261
        %p263 = pneg %p108
        %p264 = pneg %p105
        %p265 = pneg %p134
        %p266 = pneg %p131
        %s267 = sand.u32 %s121, 1
        %s268 = scalar_lea.sflag [#allocation5], %s267
        %s269 = sand.u32 %s121, 1
        %s270 = smul.addr %s269, 16
        %s271 = scalar_lea.vmem [#allocation9], %s270
        %p272 = scmp.eq.s32.totalorder %s28, 0
        // Predicated region
        $region45: #{tpu_custom_call.1} parent=31 // pred_check
          %p273 = pneg %p272
        $region46: #{tpu_custom_call.1} parent=31 // pred_check_branch
          %275 = sbr.rel (%p273) target = $region48
        $region47: #{tpu_custom_call.1} parent=31 // pred_region
          %276 = vst [vmem:[#allocation2] sm:$0xff] 0.0
          %v277 = vld [vmem:[%s223] sm:$0xff]
          %v278 = vld [vmem:[%s223 + $0x8] sm:$0xff]
          %279 = vst [vmem:[#allocation2 + $0x8] sm:$0xff] %v277
          %280 = vst [vmem:[#allocation2 + $0x10] sm:$0xff] %v278
          %281 = vst [vmem:[#allocation2 + $0x18] sm:$0xff] 0.0
        $region48: #{tpu_custom_call.1} parent=31 // pred_fallthru
          _
        %v282 = vld [vmem:[#allocation2] sm:$0xff]
        %v283 = vld [vmem:[#allocation2 + $0x8] sm:$0xff]
        %v284 = vld [vmem:[#allocation2 + $0x10] sm:$0xff]
        %v285 = vld [vmem:[#allocation2 + $0x18] sm:$0xff]
        %vm289 = vcmask 1046528
        %v290 = vrot.slane %v282, 1
        %v291 = vrot.slane %v283, 1
        %v292 = vsel %vm289, %v290, %v291
        %v293 = vrot.slane %v284, 1
        %v294 = vsel %vm289, %v291, %v293
        %vm295 = vcmask 1045504
        %v296 = vrot.slane %v282, 2
        %v297 = vrot.slane %v283, 2
        %v298 = vsel %vm295, %v296, %v297
        %v299 = vrot.slane %v284, 2
        %v300 = vsel %vm295, %v297, %v299
        %vm301 = vcmask 1044480
        %v302 = vrot.slane %v283, 3
        %v303 = vrot.slane %v284, 3
        %v304 = vsel %vm301, %v302, %v303
        %vm306 = vcmask 1043456
        %v307 = vrot.slane %v283, 4
        %v308 = vrot.slane %v284, 4
        %v309 = vsel %vm306, %v307, %v308
        %v310 = vrot.slane %v285, 4
        %v311 = vsel %vm306, %v308, %v310
        %vm312 = vcmask 1042432
        %v313 = vrot.slane %v283, 5
        %v314 = vrot.slane %v284, 5
        %v315 = vsel %vm312, %v313, %v314
        %v316 = vrot.slane %v285, 5
        %v317 = vsel %vm312, %v314, %v316
        %vm318 = vcmask 1041408
        %v319 = vrot.slane %v283, 6
        %v320 = vrot.slane %v284, 6
        %v321 = vsel %vm318, %v319, %v320
        %v322 = vrot.slane %v285, 6
        %v323 = vsel %vm318, %v320, %v322
        %v324 = vld [vmem:[%s232] sm:$0xff]
        %v325 = vld [vmem:[%s232 + $0x8] sm:$0xff]
        %v326 = vld [vmem:[%s232 + $0x10] sm:$0xff]
        %v327 = vld [vmem:[%s232 + $0x18] sm:$0xff]
        %v328 = vld [vmem:[%s232 + $0x20] sm:$0xff]
        %v329 = vld [vmem:[%s232 + $0x28] sm:$0xff]
        %v330 = vld [vmem:[%s232 + $0x30] sm:$0xff]
        %v331 = vld [vmem:[%s232 + $0x38] sm:$0xff]
        %v332 = vld [vmem:[%s232 + $0x40] sm:$0xff]
        %v333 = vld [vmem:[%s232 + $0x48] sm:$0xff]
        %v334 = vld [vmem:[%s232 + $0x50] sm:$0xff]
        %v335 = vld [vmem:[%s232 + $0x58] sm:$0xff]
        %v336 = vld [vmem:[%s232 + $0x60] sm:$0xff]
        %v337 = vld [vmem:[%s232 + $0x68] sm:$0xff]
        %v338 = vld [vmem:[%s232 + $0x70] sm:$0xff]
        %v339 = vld [vmem:[%s232 + $0x78] sm:$0xff]
        %v340 = vld [vmem:[%s232 + $0x80] sm:$0xff]
        %v341 = vld [vmem:[%s232 + $0x88] sm:$0xff]
        %v342 = vld [vmem:[%s232 + $0x90] sm:$0xff]
        %v343 = vld [vmem:[%s232 + $0x98] sm:$0xff]
        %v344 = vld [vmem:[%s232 + $0xa0] sm:$0xff]
        %v345 = vld [vmem:[%s232 + $0xa8] sm:$0xff]
        %v346 = vld [vmem:[%s232 + $0xb0] sm:$0xff]
        %v347 = vld [vmem:[%s232 + $0xb8] sm:$0xff]
        %v348 = vld [vmem:[%s232 + $0xc0] sm:$0xff]
        %v349 = vld [vmem:[%s232 + $0xc8] sm:$0xff]
        %v350 = vld [vmem:[%s232 + $0xd0] sm:$0xff]
        %v351 = vld [vmem:[%s232 + $0xd8] sm:$0xff]
        %v352 = vld [vmem:[%s232 + $0xe0] sm:$0xff]
        %v353 = vld [vmem:[%s232 + $0xe8] sm:$0xff]
        %v354 = vld [vmem:[%s232 + $0xf0] sm:$0xff]
        %v355 = vld [vmem:[%s232 + $0xf8] sm:$0xff]
        %v356 = vld [vmem:[%s232 + $0x100] sm:$0xff]
        %v357 = vld [vmem:[%s232 + $0x108] sm:$0xff]
        %v358 = vld [vmem:[%s232 + $0x110] sm:$0xff]
        %v359 = vld [vmem:[%s232 + $0x118] sm:$0xff]
        %v360 = vld [vmem:[%s232 + $0x120] sm:$0xff]
        %v361 = vld [vmem:[%s232 + $0x128] sm:$0xff]
        %v362 = vld [vmem:[%s232 + $0x130] sm:$0xff]
        %v363 = vld [vmem:[%s232 + $0x138] sm:$0xff]
        %v364 = vld [vmem:[%s232 + $0x140] sm:$0xff]
        %v365 = vld [vmem:[%s232 + $0x148] sm:$0xff]
        %v366 = vld [vmem:[%s232 + $0x150] sm:$0xff]
        %v367 = vld [vmem:[%s232 + $0x158] sm:$0xff]
        %v368 = vld [vmem:[%s232 + $0x160] sm:$0xff]
        %v369 = vld [vmem:[%s232 + $0x168] sm:$0xff]
        %v370 = vld [vmem:[%s232 + $0x170] sm:$0xff]
        %v371 = vld [vmem:[%s232 + $0x178] sm:$0xff]
        %v372 = vld [vmem:[%s232 + $0x180] sm:$0xff]
        %v373 = vld [vmem:[%s232 + $0x188] sm:$0xff]
        %v374 = vld [vmem:[%s232 + $0x190] sm:$0xff]
        %v375 = vld [vmem:[%s232 + $0x198] sm:$0xff]
        %v376 = vld [vmem:[%s232 + $0x1a0] sm:$0xff]
        %v377 = vld [vmem:[%s232 + $0x1a8] sm:$0xff]
        %v378 = vld [vmem:[%s232 + $0x1b0] sm:$0xff]
        %v379 = vld [vmem:[%s232 + $0x1b8] sm:$0xff]
        %v380 = vld [vmem:[%s232 + $0x1c0] sm:$0xff]
        %v381 = vld [vmem:[%s232 + $0x1c8] sm:$0xff]
        %v382 = vld [vmem:[%s232 + $0x1d0] sm:$0xff]
        %v383 = vld [vmem:[%s232 + $0x1d8] sm:$0xff]
        %v384 = vld [vmem:[%s232 + $0x1e0] sm:$0xff]
        %v385 = vld [vmem:[%s232 + $0x1e8] sm:$0xff]
        %v386 = vld [vmem:[%s232 + $0x1f0] sm:$0xff]
        %v387 = vld [vmem:[%s232 + $0x1f8] sm:$0xff]
        %v388 = vld [vmem:[%s232 + $0x200] sm:$0xff]
        %v389 = vld [vmem:[%s232 + $0x208] sm:$0xff]
        %v390 = vld [vmem:[%s232 + $0x210] sm:$0xff]
        %v391 = vld [vmem:[%s232 + $0x218] sm:$0xff]
        %v392 = vld [vmem:[%s232 + $0x220] sm:$0xff]
        %v393 = vld [vmem:[%s232 + $0x228] sm:$0xff]
        %v394 = vld [vmem:[%s232 + $0x230] sm:$0xff]
        %v395 = vld [vmem:[%s232 + $0x238] sm:$0xff]
        %v396 = vld [vmem:[%s232 + $0x240] sm:$0xff]
        %v397 = vld [vmem:[%s232 + $0x248] sm:$0xff]
        %v398 = vld [vmem:[%s232 + $0x250] sm:$0xff]
        %v399 = vld [vmem:[%s232 + $0x258] sm:$0xff]
        %v400 = vld [vmem:[%s232 + $0x260] sm:$0xff]
        %v401 = vld [vmem:[%s232 + $0x268] sm:$0xff]
        %v402 = vld [vmem:[%s232 + $0x270] sm:$0xff]
        %v403 = vld [vmem:[%s232 + $0x278] sm:$0xff]
        %v404 = vld [vmem:[%s232 + $0x280] sm:$0xff]
        %v405 = vld [vmem:[%s232 + $0x288] sm:$0xff]
        %v406 = vld [vmem:[%s232 + $0x290] sm:$0xff]
        %v407 = vld [vmem:[%s232 + $0x298] sm:$0xff]
        %v408 = vld [vmem:[%s232 + $0x2a0] sm:$0xff]
        %v409 = vld [vmem:[%s232 + $0x2a8] sm:$0xff]
        %v410 = vld [vmem:[%s232 + $0x2b0] sm:$0xff]
        %v411 = vld [vmem:[%s232 + $0x2b8] sm:$0xff]
        %v412 = vld [vmem:[%s232 + $0x2c0] sm:$0xff]
        %v413 = vld [vmem:[%s232 + $0x2c8] sm:$0xff]
        %v414 = vld [vmem:[%s232 + $0x2d0] sm:$0xff]
        %v415 = vld [vmem:[%s232 + $0x2d8] sm:$0xff]
        %v416 = vld [vmem:[%s232 + $0x2e0] sm:$0xff]
        %v417 = vld [vmem:[%s232 + $0x2e8] sm:$0xff]
        %v418 = vld [vmem:[%s232 + $0x2f0] sm:$0xff]
        %v419 = vld [vmem:[%s232 + $0x2f8] sm:$0xff]
        %v420 = vld [vmem:[%s232 + $0x300] sm:$0xff]
        %v421 = vld [vmem:[%s232 + $0x308] sm:$0xff]
        %v422 = vld [vmem:[%s232 + $0x310] sm:$0xff]
        %v423 = vld [vmem:[%s232 + $0x318] sm:$0xff]
        %v424 = vld [vmem:[%s232 + $0x320] sm:$0xff]
        %v425 = vld [vmem:[%s232 + $0x328] sm:$0xff]
        %v426 = vld [vmem:[%s232 + $0x330] sm:$0xff]
        %v427 = vld [vmem:[%s232 + $0x338] sm:$0xff]
        %v428 = vld [vmem:[%s232 + $0x340] sm:$0xff]
        %v429 = vld [vmem:[%s232 + $0x348] sm:$0xff]
        %v430 = vld [vmem:[%s232 + $0x350] sm:$0xff]
        %v431 = vld [vmem:[%s232 + $0x358] sm:$0xff]
        %v432 = vld [vmem:[%s232 + $0x360] sm:$0xff]
        %v433 = vld [vmem:[%s232 + $0x368] sm:$0xff]
        %v434 = vld [vmem:[%s232 + $0x370] sm:$0xff]
        %v435 = vld [vmem:[%s232 + $0x378] sm:$0xff]
        %v436 = vld [vmem:[%s240] sm:$0x1]
        %v438 = vlaneseq
        %v439 = vshrl.u32 %v438, 7
        %v440 = vsub.s32 0, %v439
        %v441 = vrot.slane %v436, %v440
        %v443 = vrot.slane %v282, 5
        %v444 = vsel %vm312, %v443, %v313
        %v445 = vrot.slane %v292, 5
        %v446 = vrot.slane %v294, 5
        %v447 = vsel %vm312, %v445, %v446
        %v448 = vrot.slane %v298, 5
        %v449 = vrot.slane %v300, 5
        %v450 = vsel %vm312, %v448, %v449
        %v451 = vrot.slane %v302, 5
        %v452 = vrot.slane %v304, 5
        %v453 = vsel %vm312, %v451, %v452
        %v454 = vrot.slane %v307, 5
        %v455 = vrot.slane %v309, 5
        %v456 = vsel %vm312, %v454, %v455
        %v457 = vrot.slane %v313, 5
        %v458 = vrot.slane %v315, 5
        %v459 = vsel %vm312, %v457, %v458
        %v460 = vrot.slane %v319, 5
        %v461 = vrot.slane %v321, 5
        %v462 = vsel %vm312, %v460, %v461
        %v463 = vrot.slane %v293, 5
        %v464 = vsel %vm312, %v446, %v463
        %v465 = vrot.slane %v299, 5
        %v466 = vsel %vm312, %v449, %v465
        %v467 = vrot.slane %v303, 5
        %v468 = vsel %vm312, %v452, %v467
        %v469 = vrot.slane %v311, 5
        %v470 = vsel %vm312, %v455, %v469
        %v471 = vrot.slane %v317, 5
        %v472 = vsel %vm312, %v458, %v471
        %v473 = vrot.slane %v323, 5
        %v474 = vsel %vm312, %v461, %v473
        %489 = vmatprep.subr.mxu0 0.0
        %490 = vmatpush1.msra.mxu0 %v339
        %491 = vmatprep.subr.mxu0 0.0
        %492 = vmatpush1.msra.mxu0 %v338
        %493 = vmatprep.subr.mxu0 0.0
        %494 = vmatpush1.msra.mxu0 %v337
        %495 = vmatprep.subr.mxu0 0.0
        %496 = vmatpush1.msra.mxu0 %v336
        %497 = vmatprep.subr.mxu0 0.0
        %498 = vmatpush1.msra.mxu0 %v335
        %499 = vmatprep.subr.mxu0 0.0
        %500 = vmatpush1.msra.mxu0 %v334
        %501 = vmatprep.subr.mxu0 0.0
        %502 = vmatpush1.msra.mxu0 %v333
        %503 = vmatprep.subr.mxu0 0.0
        %504 = vmatpush1.msra.mxu0 %v332
        %505 = vmatprep.subr.mxu0 0.0
        %506 = vmatpush1.msra.mxu0 %v331
        %507 = vmatprep.subr.mxu0 0.0
        %508 = vmatpush1.msra.mxu0 %v330
        %509 = vmatprep.subr.mxu0 0.0
        %510 = vmatpush1.msra.mxu0 %v329
        %511 = vmatprep.subr.mxu0 0.0
        %512 = vmatpush1.msra.mxu0 %v328
        %513 = vmatprep.subr.mxu0 0.0
        %514 = vmatpush1.msra.mxu0 %v327
        %515 = vmatprep.subr.mxu0 0.0
        %516 = vmatpush1.msra.mxu0 %v326
        %517 = vmatprep.subr.mxu0 0.0
        %518 = vmatpush1.msra.mxu0 %v325
        %519 = vmatprep.subr.mxu0 0.0
        %520 = vmatpush1.msra.mxu0 %v324
        %521 = vmatprep.subr.mxu0 0.0
        %522 = vmatpush2.msra.mxu0 %v355
        %523 = vmatprep.subr.mxu0 0.0
        %524 = vmatpush2.msra.mxu0 %v354
        %525 = vmatprep.subr.mxu0 0.0
        %526 = vmatpush2.msra.mxu0 %v353
        %527 = vmatprep.subr.mxu0 0.0
        %528 = vmatpush2.msra.mxu0 %v352
        %529 = vmatprep.subr.mxu0 0.0
        %530 = vmatpush2.msra.mxu0 %v351
        %531 = vmatprep.subr.mxu0 0.0
        %532 = vmatpush2.msra.mxu0 %v350
        %533 = vmatprep.subr.mxu0 0.0
        %534 = vmatpush2.msra.mxu0 %v349
        %535 = vmatprep.subr.mxu0 0.0
        %536 = vmatpush2.msra.mxu0 %v348
        %537 = vmatprep.subr.mxu0 0.0
        %538 = vmatpush2.msra.mxu0 %v347
        %539 = vmatprep.subr.mxu0 0.0
        %540 = vmatpush2.msra.mxu0 %v346
        %541 = vmatprep.subr.mxu0 0.0
        %542 = vmatpush2.msra.mxu0 %v345
        %543 = vmatprep.subr.mxu0 0.0
        %544 = vmatpush2.msra.mxu0 %v344
        %545 = vmatprep.subr.mxu0 0.0
        %546 = vmatpush2.msra.mxu0 %v343
        %547 = vmatprep.subr.mxu0 0.0
        %548 = vmatpush2.msra.mxu0 %v342
        %549 = vmatprep.subr.mxu0 0.0
        %550 = vmatpush2.msra.mxu0 %v341
        %551 = vmatprep.subr.mxu0 0.0
        %552 = vmatpush2.msra.mxu0 %v340
        %553 = vmatprep.mubr.f32.mxu0 %v447
        %554 = vmatmul.mubr.f32.gmra.mxu0 %v444
        %v555 = vpop.f32.mrf.mxu0
        %v556 = vadd.f32 %v441, %v555
        %v557 = vpop.f32.mrf.mxu0
        %558 = vmatprep.mubr.f32.mxu0 %v464
        %559 = vmatmul.mubr.f32.gmra.mxu0 %v315
        %v560 = vpop.f32.mrf.mxu0
        %v561 = vadd.f32 %v441, %v560
        %v562 = vpop.f32.mrf.mxu0
        %563 = vdwg.mxu0
        %564 = vmatprep.subr.mxu0 0.0
        %565 = vmatpush1.msra.mxu0 %v371
        %566 = vmatprep.subr.mxu0 0.0
        %567 = vmatpush1.msra.mxu0 %v370
        %568 = vmatprep.subr.mxu0 0.0
        %569 = vmatpush1.msra.mxu0 %v369
        %570 = vmatprep.subr.mxu0 0.0
        %571 = vmatpush1.msra.mxu0 %v368
        %572 = vmatprep.subr.mxu0 0.0
        %573 = vmatpush1.msra.mxu0 %v367
        %574 = vmatprep.subr.mxu0 0.0
        %575 = vmatpush1.msra.mxu0 %v366
        %576 = vmatprep.subr.mxu0 0.0
        %577 = vmatpush1.msra.mxu0 %v365
        %578 = vmatprep.subr.mxu0 0.0
        %579 = vmatpush1.msra.mxu0 %v364
        %580 = vmatprep.subr.mxu0 0.0
        %581 = vmatpush1.msra.mxu0 %v363
        %582 = vmatprep.subr.mxu0 0.0
        %583 = vmatpush1.msra.mxu0 %v362
        %584 = vmatprep.subr.mxu0 0.0
        %585 = vmatpush1.msra.mxu0 %v361
        %586 = vmatprep.subr.mxu0 0.0
        %587 = vmatpush1.msra.mxu0 %v360
        %588 = vmatprep.subr.mxu0 0.0
        %589 = vmatpush1.msra.mxu0 %v359
        %590 = vmatprep.subr.mxu0 0.0
        %591 = vmatpush1.msra.mxu0 %v358
        %592 = vmatprep.subr.mxu0 0.0
        %593 = vmatpush1.msra.mxu0 %v357
        %594 = vmatprep.subr.mxu0 0.0
        %595 = vmatpush1.msra.mxu0 %v356
        %596 = vmatprep.subr.mxu0 0.0
        %597 = vmatpush2.msra.mxu0 %v387
        %598 = vmatprep.subr.mxu0 0.0
        %599 = vmatpush2.msra.mxu0 %v386
        %600 = vmatprep.subr.mxu0 0.0
        %601 = vmatpush2.msra.mxu0 %v385
        %602 = vmatprep.subr.mxu0 0.0
        %603 = vmatpush2.msra.mxu0 %v384
        %604 = vmatprep.subr.mxu0 0.0
        %605 = vmatpush2.msra.mxu0 %v383
        %606 = vmatprep.subr.mxu0 0.0
        %607 = vmatpush2.msra.mxu0 %v382
        %608 = vmatprep.subr.mxu0 0.0
        %609 = vmatpush2.msra.mxu0 %v381
        %610 = vmatprep.subr.mxu0 0.0
        %611 = vmatpush2.msra.mxu0 %v380
        %612 = vmatprep.subr.mxu0 0.0
        %613 = vmatpush2.msra.mxu0 %v379
        %614 = vmatprep.subr.mxu0 0.0
        %615 = vmatpush2.msra.mxu0 %v378
        %616 = vmatprep.subr.mxu0 0.0
        %617 = vmatpush2.msra.mxu0 %v377
        %618 = vmatprep.subr.mxu0 0.0
        %619 = vmatpush2.msra.mxu0 %v376
        %620 = vmatprep.subr.mxu0 0.0
        %621 = vmatpush2.msra.mxu0 %v375
        %622 = vmatprep.subr.mxu0 0.0
        %623 = vmatpush2.msra.mxu0 %v374
        %624 = vmatprep.subr.mxu0 0.0
        %625 = vmatpush2.msra.mxu0 %v373
        %626 = vmatprep.subr.mxu0 0.0
        %627 = vmatpush2.msra.mxu0 %v372
        %628 = vmatprep.mubr.f32.mxu0 %v453
        %629 = vmatmul.mubr.f32.gmra.mxu0 %v450
        %v630 = vpop.f32.mrf.mxu0
        %v631 = vadd.f32 %v556, %v630
        %v632 = vpop.f32.mrf.mxu0
        %633 = vmatprep.mubr.f32.mxu0 %v468
        %634 = vmatmul.mubr.f32.gmra.mxu0 %v466
        %v635 = vpop.f32.mrf.mxu0
        %v636 = vadd.f32 %v561, %v635
        %v637 = vpop.f32.mrf.mxu0
        %638 = vdwg.mxu0
        %639 = vmatprep.subr.mxu0 0.0
        %640 = vmatpush1.msra.mxu0 %v403
        %641 = vmatprep.subr.mxu0 0.0
        %642 = vmatpush1.msra.mxu0 %v402
        %643 = vmatprep.subr.mxu0 0.0
        %644 = vmatpush1.msra.mxu0 %v401
        %645 = vmatprep.subr.mxu0 0.0
        %646 = vmatpush1.msra.mxu0 %v400
        %647 = vmatprep.subr.mxu0 0.0
        %648 = vmatpush1.msra.mxu0 %v399
        %649 = vmatprep.subr.mxu0 0.0
        %650 = vmatpush1.msra.mxu0 %v398
        %651 = vmatprep.subr.mxu0 0.0
        %652 = vmatpush1.msra.mxu0 %v397
        %653 = vmatprep.subr.mxu0 0.0
        %654 = vmatpush1.msra.mxu0 %v396
        %655 = vmatprep.subr.mxu0 0.0
        %656 = vmatpush1.msra.mxu0 %v395
        %657 = vmatprep.subr.mxu0 0.0
        %658 = vmatpush1.msra.mxu0 %v394
        %659 = vmatprep.subr.mxu0 0.0
        %660 = vmatpush1.msra.mxu0 %v393
        %661 = vmatprep.subr.mxu0 0.0
        %662 = vmatpush1.msra.mxu0 %v392
        %663 = vmatprep.subr.mxu0 0.0
        %664 = vmatpush1.msra.mxu0 %v391
        %665 = vmatprep.subr.mxu0 0.0
        %666 = vmatpush1.msra.mxu0 %v390
        %667 = vmatprep.subr.mxu0 0.0
        %668 = vmatpush1.msra.mxu0 %v389
        %669 = vmatprep.subr.mxu0 0.0
        %670 = vmatpush1.msra.mxu0 %v388
        %671 = vmatprep.subr.mxu0 0.0
        %672 = vmatpush2.msra.mxu0 %v419
        %673 = vmatprep.subr.mxu0 0.0
        %674 = vmatpush2.msra.mxu0 %v418
        %675 = vmatprep.subr.mxu0 0.0
        %676 = vmatpush2.msra.mxu0 %v417
        %677 = vmatprep.subr.mxu0 0.0
        %678 = vmatpush2.msra.mxu0 %v416
        %679 = vmatprep.subr.mxu0 0.0
        %680 = vmatpush2.msra.mxu0 %v415
        %681 = vmatprep.subr.mxu0 0.0
        %682 = vmatpush2.msra.mxu0 %v414
        %683 = vmatprep.subr.mxu0 0.0
        %684 = vmatpush2.msra.mxu0 %v413
        %685 = vmatprep.subr.mxu0 0.0
        %686 = vmatpush2.msra.mxu0 %v412
        %687 = vmatprep.subr.mxu0 0.0
        %688 = vmatpush2.msra.mxu0 %v411
        %689 = vmatprep.subr.mxu0 0.0
        %690 = vmatpush2.msra.mxu0 %v410
        %691 = vmatprep.subr.mxu0 0.0
        %692 = vmatpush2.msra.mxu0 %v409
        %693 = vmatprep.subr.mxu0 0.0
        %694 = vmatpush2.msra.mxu0 %v408
        %695 = vmatprep.subr.mxu0 0.0
        %696 = vmatpush2.msra.mxu0 %v407
        %697 = vmatprep.subr.mxu0 0.0
        %698 = vmatpush2.msra.mxu0 %v406
        %699 = vmatprep.subr.mxu0 0.0
        %700 = vmatpush2.msra.mxu0 %v405
        %701 = vmatprep.subr.mxu0 0.0
        %702 = vmatpush2.msra.mxu0 %v404
        %703 = vmatprep.mubr.f32.mxu0 %v459
        %704 = vmatmul.mubr.f32.gmra.mxu0 %v456
        %v705 = vpop.f32.mrf.mxu0
        %v706 = vadd.f32 %v631, %v705
        %v707 = vpop.f32.mrf.mxu0
        %708 = vmatprep.mubr.f32.mxu0 %v472
        %709 = vmatmul.mubr.f32.gmra.mxu0 %v470
        %v710 = vpop.f32.mrf.mxu0
        %v711 = vadd.f32 %v636, %v710
        %v712 = vpop.f32.mrf.mxu0
        %713 = vdwg.mxu0
        %714 = vmatprep.subr.mxu0 0.0
        %715 = vmatpush1.msra.mxu0 %v435
        %716 = vmatprep.subr.mxu0 0.0
        %717 = vmatpush1.msra.mxu0 %v434
        %718 = vmatprep.subr.mxu0 0.0
        %719 = vmatpush1.msra.mxu0 %v433
        %720 = vmatprep.subr.mxu0 0.0
        %721 = vmatpush1.msra.mxu0 %v432
        %722 = vmatprep.subr.mxu0 0.0
        %723 = vmatpush1.msra.mxu0 %v431
        %724 = vmatprep.subr.mxu0 0.0
        %725 = vmatpush1.msra.mxu0 %v430
        %726 = vmatprep.subr.mxu0 0.0
        %727 = vmatpush1.msra.mxu0 %v429
        %728 = vmatprep.subr.mxu0 0.0
        %729 = vmatpush1.msra.mxu0 %v428
        %730 = vmatprep.subr.mxu0 0.0
        %731 = vmatpush1.msra.mxu0 %v427
        %732 = vmatprep.subr.mxu0 0.0
        %733 = vmatpush1.msra.mxu0 %v426
        %734 = vmatprep.subr.mxu0 0.0
        %735 = vmatpush1.msra.mxu0 %v425
        %736 = vmatprep.subr.mxu0 0.0
        %737 = vmatpush1.msra.mxu0 %v424
        %738 = vmatprep.subr.mxu0 0.0
        %739 = vmatpush1.msra.mxu0 %v423
        %740 = vmatprep.subr.mxu0 0.0
        %741 = vmatpush1.msra.mxu0 %v422
        %742 = vmatprep.subr.mxu0 0.0
        %743 = vmatpush1.msra.mxu0 %v421
        %744 = vmatprep.subr.mxu0 0.0
        %745 = vmatpush1.msra.mxu0 %v420
        %746 = vmatprep.subr.mxu0 0.0
        %747 = vmatpush2.msra.mxu0 0.0
        %748 = vmatprep.subr.mxu0 0.0
        %749 = vmatpush2.msra.mxu0 0.0
        %750 = vmatprep.subr.mxu0 0.0
        %751 = vmatpush2.msra.mxu0 0.0
        %752 = vmatprep.subr.mxu0 0.0
        %753 = vmatpush2.msra.mxu0 0.0
        %754 = vmatprep.subr.mxu0 0.0
        %755 = vmatpush2.msra.mxu0 0.0
        %756 = vmatprep.subr.mxu0 0.0
        %757 = vmatpush2.msra.mxu0 0.0
        %758 = vmatprep.subr.mxu0 0.0
        %759 = vmatpush2.msra.mxu0 0.0
        %760 = vmatprep.subr.mxu0 0.0
        %761 = vmatpush2.msra.mxu0 0.0
        %762 = vmatprep.subr.mxu0 0.0
        %763 = vmatpush2.msra.mxu0 0.0
        %764 = vmatprep.subr.mxu0 0.0
        %765 = vmatpush2.msra.mxu0 0.0
        %766 = vmatprep.subr.mxu0 0.0
        %767 = vmatpush2.msra.mxu0 0.0
        %768 = vmatprep.subr.mxu0 0.0
        %769 = vmatpush2.msra.mxu0 0.0
        %770 = vmatprep.subr.mxu0 0.0
        %771 = vmatpush2.msra.mxu0 0.0
        %772 = vmatprep.subr.mxu0 0.0
        %773 = vmatpush2.msra.mxu0 0.0
        %774 = vmatprep.subr.mxu0 0.0
        %775 = vmatpush2.msra.mxu0 0.0
        %776 = vmatprep.subr.mxu0 0.0
        %777 = vmatpush2.msra.mxu0 0.0
        %778 = vmatprep.mubr.f32.mxu0 0.0
        %779 = vmatmul.mubr.f32.gmra.mxu0 %v462
        %v780 = vpop.f32.mrf.mxu0
        %v781 = vadd.f32 %v706, %v780
        %v782 = vpop.f32.mrf.mxu0
        %783 = vmatprep.mubr.f32.mxu0 0.0
        %784 = vmatmul.mubr.f32.gmra.mxu0 %v474
        %v785 = vpop.f32.mrf.mxu0
        %v786 = vadd.f32 %v711, %v785
        %v787 = vpop.f32.mrf.mxu0
        %788 = vdwg.mxu0
        %vm789 = vcmp.ge.f32.partialorder %v781, 0.0
        %vm790 = vcmp.ge.f32.partialorder %v786, 0.0
        %v791 = vmul.f32 %v781, 0.01
        %v792 = vmul.f32 %v786, 0.01
        %v793 = vsel %vm789, %v781, %v791
        %v794 = vsel %vm790, %v786, %v792
        %p795 = scmp.lt.s32.totalorder %s28, 5
        // Predicated region
        $region49: #{tpu_custom_call.1} parent=31 // pred_check
          %p796 = pneg %p795
        $region50: #{tpu_custom_call.1} parent=31 // pred_check_branch
          %798 = sbr.rel (%p796) target = $region52
        $region51: #{tpu_custom_call.1} parent=31 // pred_region
          %799 = vst [vmem:[#allocation2 + $0x8] sm:$0xff] %v793
          %800 = vst [vmem:[#allocation2 + $0x10] sm:$0xff] %v794
        $region52: #{tpu_custom_call.1} parent=31 // pred_fallthru
          _
        %p801 = scmp.eq.s32.totalorder %s28, 5
        // Predicated region
        $region53: #{tpu_custom_call.1} parent=31 // pred_check
          %p802 = pneg %p801
        $region54: #{tpu_custom_call.1} parent=31 // pred_check_branch
          %804 = sbr.rel (%p802) target = $region56
        $region55: #{tpu_custom_call.1} parent=31 // pred_region
          %805 = vst [vmem:[%s271] sm:$0xff] %v793
          %806 = vst [vmem:[%s271 + $0x8] sm:$0xff] %v794
        $region56: #{tpu_custom_call.1} parent=31 // pred_fallthru
          _
        %s807 = sand.u32 %s121, 1
        %s808 = scalar_lea.sflag [#allocation5], %s807
        %s809 = sand.u32 %s121, 1
        %s810 = smul.addr %s809, 16
        %s811 = scalar_lea.vmem [#allocation9], %s810
        // Predicated region
        $region57: #{tpu_custom_call.1} parent=31 // pred_check
          %p812 = pneg %p131
        $region58: #{tpu_custom_call.1} parent=31 // pred_check_branch
          %814 = sbr.rel (%p812) target = $region60
        $region59: #{tpu_custom_call.1} parent=31 // pred_region
          %s816 = ssub.s32 256, 256
          %817 = vsyncadd %s808, %s816
          %s818 = smul.addr %s27, 2
          %s819 = smul.addr %s818, 128
          %s820 = scalar_lea.hbm %s3, %s819
          %s821 = sshll.u32 %s811, 4
          %s822 = int_to_ptr.vmem [resolvable:$true] %s821
          %827 = dma.vmem_to_hbm [thread:$0]  %s822, 256, %s820, %s808, 128, 128, 8
        $region60: #{tpu_custom_call.1} parent=31 // pred_fallthru
          _
      $region32: #{tpu_custom_call.1} parent=5 // pred_fallthru
        _
      %p828 = scmp.le.s32.totalorder 2, %s18
      // Predicated region
      $region61: #{tpu_custom_call.1} parent=5 // pred_check
        %p829 = pneg %p828
      $region62: #{tpu_custom_call.1} parent=5 // pred_check_branch
        %831 = sbr.rel (%p829) target = $region64
      $region63: #{tpu_custom_call.1} parent=5 // pred_region
        %s832 = ssub.s32 %s18, 2
        // Predicated region
        $region65: #{tpu_custom_call.1} parent=63 // pred_check
          %p833 = pneg %p137
        $region66: #{tpu_custom_call.1} parent=63 // pred_check_branch
          %835 = sbr.rel (%p833) target = $region68
        $region67: #{tpu_custom_call.1} parent=63 // pred_region
          %s836 = sand.u32 %s122, 1
          %s837 = scalar_lea.sflag [#allocation5], %s836
          %s838 = sand.u32 %s122, 1
          %s839 = smul.addr %s838, 16
          %s840 = scalar_lea.vmem [#allocation9], %s839
          %841 = dma.done %s837, 256
        $region68: #{tpu_custom_call.1} parent=63 // pred_fallthru
          _
      $region64: #{tpu_custom_call.1} parent=5 // pred_fallthru
        _
    $region6: #{tpu_custom_call.1} parent=1 // loop_footer
      %s22 = sadd.s32 1, %s18
    $region7: #{tpu_custom_call.1} parent=1 // loop_footer_branch
      %17 = sbr.rel target = $region3
    $region8: #{tpu_custom_call.1} parent=1 // loop_exit
      _
    %842 = vsyncpa [#allocation4], 1
    %s843 = scalar_lea.sflag [#allocation4], 1
    %844 = vsyncpa %s843, 1
    %845 = vsyncpa [#allocation7], 1
    %s846 = scalar_lea.sflag [#allocation7], 1
    %847 = vsyncpa %s846, 1
    %848 = vsyncpa [#allocation5], 1
    %s849 = scalar_lea.sflag [#allocation5], 1
    %850 = vsyncpa %s849, 1

</llo_original>
